<compile_context>
chip_gen: v5e
topology: v5e:2x2
jax: 0.10.0
libtpu: 0.0.40
codegen_flags: <defaults>
</compile_context>

<pallas_src>
import functools

import jax
import jax.numpy as jnp
from jax import lax
from jax.experimental import pallas as pl
from jax.experimental.pallas import tpu as pltpu
import numpy as np

EDGE_THRESHOLD = 5  # matches nn.Module default
_THRESHOLD = (EDGE_THRESHOLD + 1) ** 2 / EDGE_THRESHOLD  # 7.2


def hard_detection_kernel(x_ref, cmax_ref, o_ref, *, h, w):
    x = x_ref[...]                       # (tc, hp, wp) float32, pad region is zero
    _, hp, wp = x.shape

    # 1) channel-wise max (precomputed over the FULL channel dim in the wrapper,
    #    broadcast over this channel tile).
    is_depth_wise_max = x == cmax_ref[...][None, :, :]

    # 2) second-derivative stencils (conv2d, zero padding).  hp > h and wp > w,
    #    and the pad region of x is already zero, so wrapped circular rolls read
    #    zeros — no per-neighbour masking needed.
    up = pltpu.roll(x, 1, 1)             # x[i-1, j]
    dn = pltpu.roll(x, hp - 1, 1)        # x[i+1, j]
    dii = up + dn - 2.0 * x
    dij = (pltpu.roll(up, 1, 2) - pltpu.roll(up, wp - 1, 2)
           - pltpu.roll(dn, 1, 2) + pltpu.roll(dn, wp - 1, 2))
    dij = 0.25 * dij
    lf = pltpu.roll(x, 1, 2)             # x[i, j-1]
    rt = pltpu.roll(x, wp - 1, 2)        # x[i, j+1]
    djj = lf + rt - 2.0 * x

    det = dii * djj - dij * dij
    tr = dii + djj
    # tr*tr/det <= T  <=>  tr*tr <= T*det given det > 0 (divide-free)
    is_not_edge = (tr * tr <= jnp.float32(_THRESHOLD) * det) & (det > 0.0)

    # 3) 3x3 local max (F.max_pool2d semantics = -inf padding): one -inf select
    #    on the shared pad mask, then plain rolls + maxes (no further selects).
    ri = lax.broadcasted_iota(jnp.int32, (1, hp, wp), 1)
    ci = lax.broadcasted_iota(jnp.int32, (1, hp, wp), 2)
    pad = (ri >= h) | (ci >= w)
    x_ninf = jnp.where(pad, jnp.float32(-jnp.inf), x)

    up_n = pltpu.roll(x_ninf, 1, 1)
    dn_n = pltpu.roll(x_ninf, hp - 1, 1)
    lm = jnp.maximum(x, jnp.maximum(up_n, dn_n))
    lm = jnp.maximum(lm, jnp.maximum(pltpu.roll(up_n, 1, 2),
                                     pltpu.roll(up_n, wp - 1, 2)))
    lm = jnp.maximum(lm, jnp.maximum(pltpu.roll(dn_n, 1, 2),
                                     pltpu.roll(dn_n, wp - 1, 2)))
    lm = jnp.maximum(lm, jnp.maximum(pltpu.roll(x_ninf, 1, 2),
                                     pltpu.roll(x_ninf, wp - 1, 2)))
    is_local_max = x == lm

    o_ref[...] = (is_depth_wise_max & is_local_max & is_not_edge).astype(jnp.int8)


@jax.jit
def hard_detection(batch):
    """batch: (b, c, h, w) float32 -> bool (b, c, h, w)."""
    b, c, h, w = batch.shape
    # Guarantee >= 1 pad row / column (sentinel-padding correctness even when
    # h % 8 == 0 or w % 128 == 0); hp multiple of 32 (int8 (32,128) output tile),
    # wp multiple of 128 (lane-dense loads/stores).
    hp = ((h + 1 + 31) // 32) * 32
    wp = ((w + 1 + 127) // 128) * 128

    # Channel max BEFORE any channel padding (zero-padded channels would corrupt
    # the max for all-negative activations).
    cmax = jnp.max(batch, axis=1)                                   # (b, h, w)
    cmax = jnp.pad(cmax, ((0, 0), (0, hp - h), (0, wp - w)))        # (b, hp, wp)

    # Channel tile: ~<= 1 MiB f32 per input block -> deep pipeline on all gens
    # and comfortable fit in v7x's 64 MiB VMEM with double buffering.
    tc = max(1, min(c, (1 << 20) // (hp * wp * 4)))
    cpad = ((c + tc - 1) // tc) * tc
    xb = jnp.pad(batch, ((0, 0), (0, cpad - c), (0, hp - h), (0, wp - w)))

    out = pl.pallas_call(
        functools.partial(hard_detection_kernel, h=h, w=w),
        out_shape=jax.ShapeDtypeStruct((b, cpad, hp, wp), jnp.int8),
        grid_spec=pltpu.PrefetchScalarGridSpec(
            num_scalar_prefetch=0,
            grid=(b, cpad // tc),
            in_specs=[
                pl.BlockSpec((None, tc, hp, wp), lambda i, j: (i, j, 0, 0)),
                pl.BlockSpec((None, hp, wp), lambda i, j: (i, 0, 0)),
            ],
            out_specs=pl.BlockSpec((None, tc, hp, wp), lambda i, j: (i, j, 0, 0)),
        ),
        compiler_params=pltpu.CompilerParams(
            dimension_semantics=("parallel", "parallel"),
            vmem_limit_bytes=48 * 1024 * 1024,
        ),
    )(xb, cmax)
    # TODO(synk): for spatial maps so large that a single (1, hp, wp) channel slice
    # exceeds ~2 MiB, add an H-band grid axis with a 1-row halo (element-offset
    # index map, central-row writes) on top of the channel tiling.
    return out[:, :c, :h, :w].astype(jnp.bool_)


def hard_detection_reference(batch):
    """Pure-JAX reference mirroring the PyTorch forward (for verification)."""
    b, c, h, w = batch.shape
    x = batch
    is_dw = x == jnp.max(x, axis=1, keepdims=True)
    lm = lax.reduce_window(
        x, -jnp.inf, lax.max, (1, 1, 3, 3), (1, 1, 1, 1),
        [(0, 0), (0, 0), (1, 1), (1, 1)],
    )
    is_lm = x == lm

    def shift(a, di, dj):
        pad = jnp.pad(a, ((0, 0), (0, 0), (1, 1), (1, 1)))
        return pad[:, :, 1 + di: 1 + di + h, 1 + dj: 1 + dj + w]

    dii = shift(x, -1, 0) + shift(x, 1, 0) - 2.0 * x
    djj = shift(x, 0, -1) + shift(x, 0, 1) - 2.0 * x
    dij = 0.25 * (shift(x, -1, -1) - shift(x, -1, 1)
                  - shift(x, 1, -1) + shift(x, 1, 1))
    det = dii * djj - dij * dij
    tr = dii + djj
    threshold = (EDGE_THRESHOLD + 1) ** 2 / EDGE_THRESHOLD
    is_ne = (tr * tr / det <= threshold) & (det > 0)
    return is_dw & is_lm & is_ne


if __name__ == "__main__":
    key = jax.random.PRNGKey(0)
    x = jax.random.normal(key, (2, 4, 16, 16), dtype=jnp.float32)

    detected = jax.block_until_ready(hard_detection(x))
    ref = hard_detection_reference(x)
    np.testing.assert_array_equal(np.asarray(detected), np.asarray(ref))

    print("KERNEL_OK")
</pallas_src>

<mosaic_0001>
module attributes {stable_mosaic.version = 11 : i64} {
  func.func @hard_detection_kernel(%arg0: i32, %arg1: i32, %arg2: memref<1x4x32x128xf32, #tpu.memory_space<vmem>>, %arg3: memref<1x32x128xf32, #tpu.memory_space<vmem>>, %arg4: memref<1x4x32x128xi8, #tpu.memory_space<vmem>>) attributes {dimension_semantics = [#tpu.dimension_semantics<parallel>, #tpu.dimension_semantics<parallel>], iteration_bounds = array<i64: 2, 1>, scalar_prefetch = 0 : i64, scratch_operands = 0 : i64, tpu.core_type = #tpu.core_type<tc>, window_params = [{transform_indices = @transform_0, window_bounds = array<i64: 1, 4, 32, 128>}, {transform_indices = @transform_1, window_bounds = array<i64: 1, 32, 128>}, {transform_indices = @transform_2, window_bounds = array<i64: 1, 4, 32, 128>}]} {
    %c0 = arith.constant 0 : index
    %c0_0 = arith.constant 0 : index
    %c0_1 = arith.constant 0 : index
    %c0_2 = arith.constant 0 : index
    %0 = vector.load %arg2[%c0, %c0_0, %c0_1, %c0_2] : memref<1x4x32x128xf32, #tpu.memory_space<vmem>>, vector<1x4x32x128xf32>
    %1 = vector.shape_cast %0 : vector<1x4x32x128xf32> to vector<4x32x128xf32>
    %c0_3 = arith.constant 0 : index
    %c0_4 = arith.constant 0 : index
    %c0_5 = arith.constant 0 : index
    %2 = vector.load %arg3[%c0_3, %c0_4, %c0_5] : memref<1x32x128xf32, #tpu.memory_space<vmem>>, vector<1x32x128xf32>
    %3 = vector.shape_cast %2 : vector<1x32x128xf32> to vector<32x128xf32>
    %4 = vector.shape_cast %3 : vector<32x128xf32> to vector<1x32x128xf32>
    %5 = vector.broadcast %4 : vector<1x32x128xf32> to vector<4x32x128xf32>
    %6 = arith.cmpf oeq, %1, %5 : vector<4x32x128xf32>
    %c1_i32 = arith.constant 1 : i32
    %7 = tpu.dynamic_rotate %1 by %c1_i32 dim 1 : vector<4x32x128xf32>, i32 -> vector<4x32x128xf32>
    %c31_i32 = arith.constant 31 : i32
    %8 = tpu.dynamic_rotate %1 by %c31_i32 dim 1 : vector<4x32x128xf32>, i32 -> vector<4x32x128xf32>
    %9 = arith.addf %7, %8 : vector<4x32x128xf32>
    %cst = arith.constant 2.000000e+00 : f32
    %10 = vector.broadcast %cst : f32 to vector<4x32x128xf32>
    %11 = arith.mulf %10, %1 : vector<4x32x128xf32>
    %12 = arith.subf %9, %11 : vector<4x32x128xf32>
    %c1_i32_6 = arith.constant 1 : i32
    %13 = tpu.dynamic_rotate %7 by %c1_i32_6 dim 2 : vector<4x32x128xf32>, i32 -> vector<4x32x128xf32>
    %c127_i32 = arith.constant 127 : i32
    %14 = tpu.dynamic_rotate %7 by %c127_i32 dim 2 : vector<4x32x128xf32>, i32 -> vector<4x32x128xf32>
    %15 = arith.subf %13, %14 : vector<4x32x128xf32>
    %c1_i32_7 = arith.constant 1 : i32
    %16 = tpu.dynamic_rotate %8 by %c1_i32_7 dim 2 : vector<4x32x128xf32>, i32 -> vector<4x32x128xf32>
    %17 = arith.subf %15, %16 : vector<4x32x128xf32>
    %c127_i32_8 = arith.constant 127 : i32
    %18 = tpu.dynamic_rotate %8 by %c127_i32_8 dim 2 : vector<4x32x128xf32>, i32 -> vector<4x32x128xf32>
    %19 = arith.addf %17, %18 : vector<4x32x128xf32>
    %cst_9 = arith.constant 2.500000e-01 : f32
    %20 = vector.broadcast %cst_9 : f32 to vector<4x32x128xf32>
    %21 = arith.mulf %20, %19 : vector<4x32x128xf32>
    %c1_i32_10 = arith.constant 1 : i32
    %22 = tpu.dynamic_rotate %1 by %c1_i32_10 dim 2 : vector<4x32x128xf32>, i32 -> vector<4x32x128xf32>
    %c127_i32_11 = arith.constant 127 : i32
    %23 = tpu.dynamic_rotate %1 by %c127_i32_11 dim 2 : vector<4x32x128xf32>, i32 -> vector<4x32x128xf32>
    %24 = arith.addf %22, %23 : vector<4x32x128xf32>
    %cst_12 = arith.constant 2.000000e+00 : f32
    %25 = vector.broadcast %cst_12 : f32 to vector<4x32x128xf32>
    %26 = arith.mulf %25, %1 : vector<4x32x128xf32>
    %27 = arith.subf %24, %26 : vector<4x32x128xf32>
    %28 = arith.mulf %12, %27 : vector<4x32x128xf32>
    %29 = arith.mulf %21, %21 : vector<4x32x128xf32>
    %30 = arith.subf %28, %29 : vector<4x32x128xf32>
    %31 = arith.addf %12, %27 : vector<4x32x128xf32>
    %32 = arith.mulf %31, %31 : vector<4x32x128xf32>
    %cst_13 = arith.constant 7.1999998 : f32
    %33 = vector.broadcast %cst_13 : f32 to vector<4x32x128xf32>
    %34 = arith.mulf %33, %30 : vector<4x32x128xf32>
    %35 = arith.cmpf ole, %32, %34 : vector<4x32x128xf32>
    %cst_14 = arith.constant 0.000000e+00 : f32
    %36 = vector.broadcast %cst_14 : f32 to vector<4x32x128xf32>
    %37 = arith.cmpf ogt, %30, %36 : vector<4x32x128xf32>
    %38 = arith.andi %35, %37 : vector<4x32x128xi1>
    %39 = tpu.iota {dimensions = array<i32: 1>} : vector<1x32x128xi32>
    %40 = tpu.iota {dimensions = array<i32: 2>} : vector<1x32x128xi32>
    %c16_i32 = arith.constant 16 : i32
    %41 = vector.broadcast %c16_i32 : i32 to vector<1x32x128xi32>
    %42 = arith.cmpi sge, %39, %41 : vector<1x32x128xi32>
    %c16_i32_15 = arith.constant 16 : i32
    %43 = vector.broadcast %c16_i32_15 : i32 to vector<1x32x128xi32>
    %44 = arith.cmpi sge, %40, %43 : vector<1x32x128xi32>
    %45 = arith.ori %42, %44 : vector<1x32x128xi1>
    %cst_16 = arith.constant 0xFF800000 : f32
    %46 = vector.shape_cast %45 : vector<1x32x128xi1> to vector<1x32x128xi1>
    %47 = vector.broadcast %46 : vector<1x32x128xi1> to vector<4x32x128xi1>
    %48 = vector.broadcast %cst_16 : f32 to vector<4x32x128xf32>
    %49 = arith.select %47, %48, %1 : vector<4x32x128xi1>, vector<4x32x128xf32>
    %c1_i32_17 = arith.constant 1 : i32
    %50 = tpu.dynamic_rotate %49 by %c1_i32_17 dim 1 : vector<4x32x128xf32>, i32 -> vector<4x32x128xf32>
    %c31_i32_18 = arith.constant 31 : i32
    %51 = tpu.dynamic_rotate %49 by %c31_i32_18 dim 1 : vector<4x32x128xf32>, i32 -> vector<4x32x128xf32>
    %52 = arith.maximumf %50, %51 : vector<4x32x128xf32>
    %53 = arith.maximumf %1, %52 : vector<4x32x128xf32>
    %c1_i32_19 = arith.constant 1 : i32
    %54 = tpu.dynamic_rotate %50 by %c1_i32_19 dim 2 : vector<4x32x128xf32>, i32 -> vector<4x32x128xf32>
    %c127_i32_20 = arith.constant 127 : i32
    %55 = tpu.dynamic_rotate %50 by %c127_i32_20 dim 2 : vector<4x32x128xf32>, i32 -> vector<4x32x128xf32>
    %56 = arith.maximumf %54, %55 : vector<4x32x128xf32>
    %57 = arith.maximumf %53, %56 : vector<4x32x128xf32>
    %c1_i32_21 = arith.constant 1 : i32
    %58 = tpu.dynamic_rotate %51 by %c1_i32_21 dim 2 : vector<4x32x128xf32>, i32 -> vector<4x32x128xf32>
    %c127_i32_22 = arith.constant 127 : i32
    %59 = tpu.dynamic_rotate %51 by %c127_i32_22 dim 2 : vector<4x32x128xf32>, i32 -> vector<4x32x128xf32>
    %60 = arith.maximumf %58, %59 : vector<4x32x128xf32>
    %61 = arith.maximumf %57, %60 : vector<4x32x128xf32>
    %c1_i32_23 = arith.constant 1 : i32
    %62 = tpu.dynamic_rotate %49 by %c1_i32_23 dim 2 : vector<4x32x128xf32>, i32 -> vector<4x32x128xf32>
    %c127_i32_24 = arith.constant 127 : i32
    %63 = tpu.dynamic_rotate %49 by %c127_i32_24 dim 2 : vector<4x32x128xf32>, i32 -> vector<4x32x128xf32>
    %64 = arith.maximumf %62, %63 : vector<4x32x128xf32>
    %65 = arith.maximumf %61, %64 : vector<4x32x128xf32>
    %66 = arith.cmpf oeq, %1, %65 : vector<4x32x128xf32>
    %67 = arith.andi %6, %66 : vector<4x32x128xi1>
    %68 = arith.andi %67, %38 : vector<4x32x128xi1>
    %69 = arith.extui %68 : vector<4x32x128xi1> to vector<4x32x128xi8>
    %c0_25 = arith.constant 0 : index
    %c0_26 = arith.constant 0 : index
    %c0_27 = arith.constant 0 : index
    %c0_28 = arith.constant 0 : index
    %70 = vector.load %arg4[%c0_25, %c0_26, %c0_27, %c0_28] : memref<1x4x32x128xi8, #tpu.memory_space<vmem>>, vector<1x4x32x128xi8>
    %71 = vector.shape_cast %70 : vector<1x4x32x128xi8> to vector<4x32x128xi8>
    %72 = vector.shape_cast %69 : vector<4x32x128xi8> to vector<1x4x32x128xi8>
    tpu.vector_store %arg4[%c0_25, %c0_26, %c0_27, %c0_28], %72 {strides = array<i32>} : memref<1x4x32x128xi8, #tpu.memory_space<vmem>>, vector<1x4x32x128xi8>,
    return
  }
  func.func @transform_0(%arg0: i32, %arg1: i32) -> (i32, i32, i32, i32) {
    %c0_i32 = arith.constant 0 : i32
    %c0_i32_0 = arith.constant 0 : i32
    %c0_i32_1 = arith.constant 0 : i32
    return %arg0, %arg1, %c0_i32, %c0_i32_0 : i32, i32, i32, i32
  }
  func.func @transform_1(%arg0: i32, %arg1: i32) -> (i32, i32, i32) {
    %c0_i32 = arith.constant 0 : i32
    %c0_i32_0 = arith.constant 0 : i32
    %c0_i32_1 = arith.constant 0 : i32
    return %arg0, %c0_i32, %c0_i32_0 : i32, i32, i32
  }
  func.func @transform_2(%arg0: i32, %arg1: i32) -> (i32, i32, i32, i32) {
    %c0_i32 = arith.constant 0 : i32
    %c0_i32_0 = arith.constant 0 : i32
    %c0_i32_1 = arith.constant 0 : i32
    return %arg0, %arg1, %c0_i32, %c0_i32_0 : i32, i32, i32, i32
  }
}

</mosaic_0001>

<llo_original>
// kernel: hard_detection.1
$region0: #{hard_detection.1}
  #allocation0 [shape = 'u32[]', space=smem, size = 0x4, offset = 0x4, fixed_abs, tag = 'smem constant byte address 0x4 - core index']
  #allocation1 [shape = 'u32[72,128]{1,0:T(1,128)}', space=vmem, size = 0x9000, scoped, tag = 'internal scratch']
  %s0 = inlined_call_operand.vmem [shape: f32[2,4,32,128], index: 0, kind: input, shape index: {}]
  %s1 = inlined_call_operand.vmem [shape: f32[2,32,128], index: 1, kind: input, shape index: {}]
  %s2 = inlined_call_operand.vmem [shape: s8[2,4,32,128], index: 2, kind: output, shape index: {}]
  %s3 = sld [smem:[#allocation0]]
  $region41: #{hard_detection.1} parent=0
    _
  %s5 = ssub.s32 1, %s3
  %s6 = scalar_select 0, %s5, %s3
  loop: start=0, step=1, limit=4
  $region2: #{hard_detection.1} parent=0 // loop_pre_header
    _
  $region3: #{hard_detection.1} parent=0 // loop_header
    %s8 = sphi 0, %s12
    %p9 = scmp.ge.s32.totalorder %s8, 4
    %s15 = sphi 0, %s27
    %s16 = sphi 0, %s23
    %s17 = sphi 0, %s15
    %s18 = sphi 0, %s16
    %s19 = sphi 0, %s17
    %s20 = sphi 0, %s18
    %s32 = sphi 0, %s34
    %s35 = sphi 0, %s32
    %s36 = sphi 0, %s35
    %s52 = sphi 0, %s36
    %s58 = sphi 0, %s60
    %s61 = sphi 0, %s58
    %s62 = sphi 0, %s61
    %s78 = sphi 0, %s62
    %s86 = sphi 0, %s88
    %s89 = sphi 0, %s86
    %s90 = sphi 0, %s89
    %s106 = sphi 0, %s90
  $region4: #{hard_detection.1} parent=0 // loop_header_branch
    %11 = sbr.rel (%p9) target = $region8
  $region5: #{hard_detection.1} parent=0 // loop_body
    %s13 = ssub.s32 %s8, 1
    %s14 = ssub.s32 %s8, 2
    %s21 = sadd.s32 1, %s16
    %p22 = scmp.ge.s32.totalorder %s21, 1
    %s23 = scalar_select %p22, 0, %s21
    %s24 = sadd.s32 1, %s15
    %s25 = scalar_select %p22, %s24, %s15
    %p26 = scmp.ge.s32.totalorder %s25, 2
    %s27 = scalar_select %p26, 0, %s25
    %s28 = ssub.s32 %s15, %s27
    %s29 = ssub.s32 %s16, %s23
    %s30 = sor.u32 %s28, %s29
    %p31 = scmp.eq.s32.totalorder %s30, 0
    %s33 = sadd.s32 %s32, 1
    %s34 = scalar_select %p31, %s32, %s33
    %p37 = pneg %p31
    %p38 = scmp.eq.s32.totalorder %s8, 1
    %p39 = por %p37, %p38
    %p40 = scmp.ne.s32.totalorder %s32, %s35
    %p41 = scmp.eq.s32.totalorder %s8, 0
    %p42 = por %p40, %p41
    %p43 = scmp.ne.s32.totalorder %s32, %s35
    %p44 = scmp.eq.s32.totalorder %s13, 1
    %p45 = por %p43, %p44
    %p46 = scmp.ne.s32.totalorder %s35, %s36
    %p47 = scmp.eq.s32.totalorder %s13, 0
    %p48 = por %p46, %p47
    %p49 = scmp.ne.s32.totalorder %s35, %s36
    %p50 = scmp.eq.s32.totalorder %s14, 1
    %p51 = por %p49, %p50
    %p53 = scmp.ne.s32.totalorder %s36, %s52
    %p54 = scmp.eq.s32.totalorder %s14, 0
    %p55 = por %p53, %p54
    %s56 = ssub.s32 %s15, %s27
    %p57 = scmp.eq.s32.totalorder %s56, 0
    %s59 = sadd.s32 %s58, 1
    %s60 = scalar_select %p57, %s58, %s59
    %p63 = pneg %p57
    %p64 = scmp.eq.s32.totalorder %s8, 1
    %p65 = por %p63, %p64
    %p66 = scmp.ne.s32.totalorder %s58, %s61
    %p67 = scmp.eq.s32.totalorder %s8, 0
    %p68 = por %p66, %p67
    %p69 = scmp.ne.s32.totalorder %s58, %s61
    %p70 = scmp.eq.s32.totalorder %s13, 1
    %p71 = por %p69, %p70
    %p72 = scmp.ne.s32.totalorder %s61, %s62
    %p73 = scmp.eq.s32.totalorder %s13, 0
    %p74 = por %p72, %p73
    %p75 = scmp.ne.s32.totalorder %s61, %s62
    %p76 = scmp.eq.s32.totalorder %s14, 1
    %p77 = por %p75, %p76
    %p79 = scmp.ne.s32.totalorder %s62, %s78
    %p80 = scmp.eq.s32.totalorder %s14, 0
    %p81 = por %p79, %p80
    %s82 = ssub.s32 %s15, %s27
    %s83 = ssub.s32 %s16, %s23
    %s84 = sor.u32 %s82, %s83
    %p85 = scmp.eq.s32.totalorder %s84, 0
    %s87 = sadd.s32 %s86, 1
    %s88 = scalar_select %p85, %s86, %s87
    %p91 = pneg %p85
    %p92 = scmp.eq.s32.totalorder %s8, 1
    %p93 = por %p91, %p92
    %p94 = scmp.ne.s32.totalorder %s86, %s89
    %p95 = scmp.eq.s32.totalorder %s8, 0
    %p96 = por %p94, %p95
    %p97 = scmp.ne.s32.totalorder %s86, %s89
    %p98 = scmp.eq.s32.totalorder %s13, 1
    %p99 = por %p97, %p98
    %p100 = scmp.ne.s32.totalorder %s89, %s90
    %p101 = scmp.eq.s32.totalorder %s13, 0
    %p102 = por %p100, %p101
    %p103 = scmp.ne.s32.totalorder %s89, %s90
    %p104 = scmp.eq.s32.totalorder %s14, 1
    %p105 = por %p103, %p104
    %p107 = scmp.ne.s32.totalorder %s90, %s106
    %p108 = scmp.eq.s32.totalorder %s14, 0
    %p109 = por %p107, %p108
    %p110 = scmp.le.s32.totalorder 1, %s8
    %p111 = scmp.lt.s32.totalorder %s8, 3
    %p112 = pnand %p110, %p111
    %p113 = pneg %p112
    // Predicated region
    $region9: #{hard_detection.1} parent=5 // pred_check
      _
    $region10: #{hard_detection.1} parent=5 // pred_check_branch
      %115 = sbr.rel (%p112) target = $region12
    $region11: #{hard_detection.1} parent=5 // pred_region
      %s116 = ssub.s32 %s8, 1
    $region12: #{hard_detection.1} parent=5 // pred_fallthru
      _
    %p117 = scmp.lt.s32.totalorder %s8, 2
    // Predicated region
    $region13: #{hard_detection.1} parent=5 // pred_check
      %p118 = pneg %p117
    $region14: #{hard_detection.1} parent=5 // pred_check_branch
      %120 = sbr.rel (%p118) target = $region16
    $region15: #{hard_detection.1} parent=5 // pred_region
      // Predicated region
      $region17: #{hard_detection.1} parent=15 // pred_check
        %p121 = pneg %p42
      $region18: #{hard_detection.1} parent=15 // pred_check_branch
        %123 = sbr.rel (%p121) target = $region20
      $region19: #{hard_detection.1} parent=15 // pred_region
        %s124 = smul.u32 4, %s16
        %p125 = scmp.lt.s32.totalorder %s15, 1
        %s126 = scalar_select %p125, %s15, 1
        %p127 = scmp.lt.s32.totalorder %s124, 3
        %s128 = scalar_select %p127, %s124, 3
        %s129 = smul.addr %s128, 4
        %s130 = smul.addr %s126, 16
        %s131 = sadd.s32 %s129, %s130
        %s132 = smul.addr %s131, 8
        %s133 = scalar_lea.vmem %s0, %s132
        %s134 = smul.u32 4, %s16
      $region20: #{hard_detection.1} parent=15 // pred_fallthru
        _
      // Predicated region
      $region21: #{hard_detection.1} parent=15 // pred_check
        %p135 = pneg %p68
      $region22: #{hard_detection.1} parent=15 // pred_check_branch
        %137 = sbr.rel (%p135) target = $region24
      $region23: #{hard_detection.1} parent=15 // pred_region
        %p138 = scmp.lt.s32.totalorder %s15, 1
        %s139 = scalar_select %p138, %s15, 1
        %s140 = smul.addr %s139, 4
        %s141 = smul.addr %s140, 8
        %s142 = scalar_lea.vmem %s1, %s141
      $region24: #{hard_detection.1} parent=15 // pred_fallthru
        _
    $region16: #{hard_detection.1} parent=5 // pred_fallthru
      _
    %p143 = scmp.le.s32.totalorder 1, %s8
    %p144 = scmp.lt.s32.totalorder %s8, 3
    %p145 = pnand %p143, %p144
    %p146 = pneg %p145
    // Predicated region
    $region25: #{hard_detection.1} parent=5 // pred_check
      _
    $region26: #{hard_detection.1} parent=5 // pred_check_branch
      %148 = sbr.rel (%p145) target = $region28
    $region27: #{hard_detection.1} parent=5 // pred_region
      %s149 = ssub.s32 %s8, 1
      %s150 = smul.u32 4, %s18
      %p151 = scmp.lt.s32.totalorder %s17, 1
      %s152 = scalar_select %p151, %s17, 1
      %p153 = scmp.lt.s32.totalorder %s150, 3
      %s154 = scalar_select %p153, %s150, 3
      %s155 = smul.addr %s154, 4
      %s156 = smul.addr %s152, 16
      %s157 = sadd.s32 %s155, %s156
      %s158 = smul.addr %s157, 8
      %s159 = scalar_lea.vmem %s0, %s158
      %p160 = pneg %p48
      %p161 = pneg %p45
      %p162 = scmp.lt.s32.totalorder %s17, 1
      %s163 = scalar_select %p162, %s17, 1
      %s164 = smul.addr %s163, 4
      %s165 = smul.addr %s164, 8
      %s166 = scalar_lea.vmem %s1, %s165
      %p167 = pneg %p74
      %p168 = pneg %p71
      %p169 = pneg %p102
      %p170 = pneg %p99
      %s171 = smul.u32 4, %s18
      %p172 = scmp.lt.s32.totalorder %s17, 1
      %s173 = scalar_select %p172, %s17, 1
      %p174 = scmp.lt.s32.totalorder %s171, 3
      %s175 = scalar_select %p174, %s171, 3
      %s176 = smul.addr %s175, 4
      %s177 = smul.addr %s173, 16
      %s178 = sadd.s32 %s176, %s177
      %s179 = smul.addr %s178, 2
      %s180 = scalar_lea.vmem %s2, %s179
      %s181 = smul.u32 4, %s18
      %p182 = scmp.lt.s32.totalorder %s17, 1
      %s183 = scalar_select %p182, %s17, 1
      %p184 = scmp.lt.s32.totalorder %s181, 3
      %s185 = scalar_select %p184, %s181, 3
      %s186 = smul.addr %s185, 4
      %s187 = smul.addr %s183, 16
      %s188 = sadd.s32 %s186, %s187
      %s189 = smul.addr %s188, 8
      %s190 = scalar_lea.vmem %s0, %s189
      %s191 = smul.u32 4, %s18
      %p192 = scmp.lt.s32.totalorder %s17, 1
      %s193 = scalar_select %p192, %s17, 1
      %s194 = smul.addr %s193, 4
      %s195 = smul.addr %s194, 8
      %s196 = scalar_lea.vmem %s1, %s195
      %s197 = smul.u32 4, %s18
      %p198 = scmp.lt.s32.totalorder %s17, 1
      %s199 = scalar_select %p198, %s17, 1
      %p200 = scmp.lt.s32.totalorder %s197, 3
      %s201 = scalar_select %p200, %s197, 3
      %s202 = smul.addr %s201, 4
      %s203 = smul.addr %s199, 16
      %s204 = sadd.s32 %s202, %s203
      %s205 = smul.addr %s204, 2
      %s206 = scalar_lea.vmem %s2, %s205
      %s207 = smul.u32 4, %s18
      %v210 = vld [vmem:[%s190] sm:$0xff]
      %v211 = vld [vmem:[%s190 + $0x8] sm:$0xff]
      %v212 = vld [vmem:[%s190 + $0x10] sm:$0xff]
      %v213 = vld [vmem:[%s190 + $0x18] sm:$0xff]
      %v214 = vld [vmem:[%s190 + $0x20] sm:$0xff]
      %v215 = vld [vmem:[%s190 + $0x28] sm:$0xff]
      %v216 = vld [vmem:[%s190 + $0x30] sm:$0xff]
      %v217 = vld [vmem:[%s190 + $0x38] sm:$0xff]
      %v218 = vld [vmem:[%s190 + $0x40] sm:$0xff]
      %v219 = vld [vmem:[%s190 + $0x48] sm:$0xff]
      %v220 = vld [vmem:[%s190 + $0x50] sm:$0xff]
      %v221 = vld [vmem:[%s190 + $0x58] sm:$0xff]
      %v222 = vld [vmem:[%s190 + $0x60] sm:$0xff]
      %v223 = vld [vmem:[%s190 + $0x68] sm:$0xff]
      %v224 = vld [vmem:[%s190 + $0x70] sm:$0xff]
      %v225 = vld [vmem:[%s190 + $0x78] sm:$0xff]
      %v226 = vld [vmem:[%s196] sm:$0xff]
      %v227 = vld [vmem:[%s196 + $0x8] sm:$0xff]
      %v228 = vld [vmem:[%s196 + $0x10] sm:$0xff]
      %v229 = vld [vmem:[%s196 + $0x18] sm:$0xff]
      %vm230 = vcmp.eq.f32.partialorder %v210, %v226
      %vm231 = vcmp.eq.f32.partialorder %v211, %v227
      %vm232 = vcmp.eq.f32.partialorder %v212, %v228
      %vm233 = vcmp.eq.f32.partialorder %v213, %v229
      %vm234 = vcmp.eq.f32.partialorder %v214, %v226
      %vm235 = vcmp.eq.f32.partialorder %v215, %v227
      %vm236 = vcmp.eq.f32.partialorder %v216, %v228
      %vm237 = vcmp.eq.f32.partialorder %v217, %v229
      %vm238 = vcmp.eq.f32.partialorder %v218, %v226
      %vm239 = vcmp.eq.f32.partialorder %v219, %v227
      %vm240 = vcmp.eq.f32.partialorder %v220, %v228
      %vm241 = vcmp.eq.f32.partialorder %v221, %v229
      %vm242 = vcmp.eq.f32.partialorder %v222, %v226
      %vm243 = vcmp.eq.f32.partialorder %v223, %v227
      %vm244 = vcmp.eq.f32.partialorder %v224, %v228
      %vm245 = vcmp.eq.f32.partialorder %v225, %v229
      %v246 = vrot.slane %v210, 7
      %v247 = vrot.slane %v214, 7
      %v248 = vrot.slane %v218, 7
      %v249 = vrot.slane %v222, 7
      %v250 = vrot.slane %v211, 7
      %v251 = vrot.slane %v215, 7
      %v252 = vrot.slane %v219, 7
      %v253 = vrot.slane %v223, 7
      %v254 = vrot.slane %v212, 7
      %v255 = vrot.slane %v216, 7
      %v256 = vrot.slane %v220, 7
      %v257 = vrot.slane %v224, 7
      %v258 = vrot.slane %v213, 7
      %v259 = vrot.slane %v217, 7
      %v260 = vrot.slane %v221, 7
      %v261 = vrot.slane %v225, 7
      %v262 = vlaneseq
      %v263 = vshrl.u32 %v262, 7
      %vm264 = vcmp.lt.s32.totalorder %v263, 1
      %v265 = vsel %vm264, %v254, %v258
      %v266 = vsel %vm264, %v255, %v259
      %v267 = vsel %vm264, %v256, %v260
      %v268 = vsel %vm264, %v257, %v261
      %v269 = vsel %vm264, %v250, %v254
      %v270 = vsel %vm264, %v251, %v255
      %v271 = vsel %vm264, %v252, %v256
      %v272 = vsel %vm264, %v253, %v257
      %v273 = vsel %vm264, %v246, %v250
      %v274 = vsel %vm264, %v247, %v251
      %v275 = vsel %vm264, %v248, %v252
      %v276 = vsel %vm264, %v249, %v253
      %v277 = vsel %vm264, %v258, %v246
      %v278 = vsel %vm264, %v259, %v247
      %v279 = vsel %vm264, %v260, %v248
      %v280 = vsel %vm264, %v261, %v249
      %v281 = vrot.slane %v210, 1
      %v282 = vrot.slane %v214, 1
      %v283 = vrot.slane %v218, 1
      %v284 = vrot.slane %v222, 1
      %v285 = vrot.slane %v211, 1
      %v286 = vrot.slane %v215, 1
      %v287 = vrot.slane %v219, 1
      %v288 = vrot.slane %v223, 1
      %v289 = vrot.slane %v212, 1
      %v290 = vrot.slane %v216, 1
      %v291 = vrot.slane %v220, 1
      %v292 = vrot.slane %v224, 1
      %v293 = vrot.slane %v213, 1
      %v294 = vrot.slane %v217, 1
      %v295 = vrot.slane %v221, 1
      %v296 = vrot.slane %v225, 1
      %vm297 = vcmp.lt.s32.totalorder %v263, 7
      %v298 = vsel %vm297, %v289, %v293
      %v299 = vsel %vm297, %v290, %v294
      %v300 = vsel %vm297, %v291, %v295
      %v301 = vsel %vm297, %v292, %v296
      %v302 = vsel %vm297, %v285, %v289
      %v303 = vsel %vm297, %v286, %v290
      %v304 = vsel %vm297, %v287, %v291
      %v305 = vsel %vm297, %v288, %v292
      %v306 = vsel %vm297, %v281, %v285
      %v307 = vsel %vm297, %v282, %v286
      %v308 = vsel %vm297, %v283, %v287
      %v309 = vsel %vm297, %v284, %v288
      %v310 = vsel %vm297, %v293, %v281
      %v311 = vsel %vm297, %v294, %v282
      %v312 = vsel %vm297, %v295, %v283
      %v313 = vsel %vm297, %v296, %v284
      %v314 = vadd.f32 %v277, %v306
      %v315 = vadd.f32 %v273, %v302
      %v316 = vadd.f32 %v269, %v298
      %v317 = vadd.f32 %v265, %v310
      %v318 = vadd.f32 %v278, %v307
      %v319 = vadd.f32 %v274, %v303
      %v320 = vadd.f32 %v270, %v299
      %v321 = vadd.f32 %v266, %v311
      %v322 = vadd.f32 %v279, %v308
      %v323 = vadd.f32 %v275, %v304
      %v324 = vadd.f32 %v271, %v300
      %v325 = vadd.f32 %v267, %v312
      %v326 = vadd.f32 %v280, %v309
      %v327 = vadd.f32 %v276, %v305
      %v328 = vadd.f32 %v272, %v301
      %v329 = vadd.f32 %v268, %v313
      %v330 = vmul.f32 %v210, 2.0
      %v331 = vmul.f32 %v211, 2.0
      %v332 = vmul.f32 %v212, 2.0
      %v333 = vmul.f32 %v213, 2.0
      %v334 = vmul.f32 %v214, 2.0
      %v335 = vmul.f32 %v215, 2.0
      %v336 = vmul.f32 %v216, 2.0
      %v337 = vmul.f32 %v217, 2.0
      %v338 = vmul.f32 %v218, 2.0
      %v339 = vmul.f32 %v219, 2.0
      %v340 = vmul.f32 %v220, 2.0
      %v341 = vmul.f32 %v221, 2.0
      %v342 = vmul.f32 %v222, 2.0
      %v343 = vmul.f32 %v223, 2.0
      %v344 = vmul.f32 %v224, 2.0
      %v345 = vmul.f32 %v225, 2.0
      %v346 = vsub.f32 %v314, %v330
      %v347 = vsub.f32 %v315, %v331
      %v348 = vsub.f32 %v316, %v332
      %v349 = vsub.f32 %v317, %v333
      %v350 = vsub.f32 %v318, %v334
      %v351 = vsub.f32 %v319, %v335
      %v352 = vsub.f32 %v320, %v336
      %v353 = vsub.f32 %v321, %v337
      %v354 = vsub.f32 %v322, %v338
      %v355 = vsub.f32 %v323, %v339
      %v356 = vsub.f32 %v324, %v340
      %v357 = vsub.f32 %v325, %v341
      %v358 = vsub.f32 %v326, %v342
      %v359 = vsub.f32 %v327, %v343
      %v360 = vsub.f32 %v328, %v344
      %v361 = vsub.f32 %v329, %v345
      %362 = vrot.lane.b32.xlu0 %v277, 1
      %v363 = vpop.permute.xlu0 %362
      %364 = vrot.lane.b32.xlu0 %v273, 1
      %v365 = vpop.permute.xlu0 %364
      %366 = vrot.lane.b32.xlu0 %v269, 1
      %v367 = vpop.permute.xlu0 %366
      %368 = vrot.lane.b32.xlu0 %v265, 1
      %v369 = vpop.permute.xlu0 %368
      %370 = vrot.lane.b32.xlu0 %v278, 1
      %v371 = vpop.permute.xlu0 %370
      %372 = vrot.lane.b32.xlu0 %v274, 1
      %v373 = vpop.permute.xlu0 %372
      %374 = vrot.lane.b32.xlu0 %v270, 1
      %v375 = vpop.permute.xlu0 %374
      %376 = vrot.lane.b32.xlu0 %v266, 1
      %v377 = vpop.permute.xlu0 %376
      %378 = vrot.lane.b32.xlu0 %v279, 1
      %v379 = vpop.permute.xlu0 %378
      %380 = vrot.lane.b32.xlu0 %v275, 1
      %v381 = vpop.permute.xlu0 %380
      %382 = vrot.lane.b32.xlu0 %v271, 1
      %v383 = vpop.permute.xlu0 %382
      %384 = vrot.lane.b32.xlu0 %v267, 1
      %v385 = vpop.permute.xlu0 %384
      %386 = vrot.lane.b32.xlu0 %v280, 1
      %v387 = vpop.permute.xlu0 %386
      %388 = vrot.lane.b32.xlu0 %v276, 1
      %v389 = vpop.permute.xlu0 %388
      %390 = vrot.lane.b32.xlu0 %v272, 1
      %v391 = vpop.permute.xlu0 %390
      %392 = vrot.lane.b32.xlu0 %v268, 1
      %v393 = vpop.permute.xlu0 %392
      %394 = vrot.lane.b32.xlu0 %v277, 127
      %v395 = vpop.permute.xlu0 %394
      %396 = vrot.lane.b32.xlu0 %v273, 127
      %v397 = vpop.permute.xlu0 %396
      %398 = vrot.lane.b32.xlu0 %v269, 127
      %v399 = vpop.permute.xlu0 %398
      %400 = vrot.lane.b32.xlu0 %v265, 127
      %v401 = vpop.permute.xlu0 %400
      %402 = vrot.lane.b32.xlu0 %v278, 127
      %v403 = vpop.permute.xlu0 %402
      %404 = vrot.lane.b32.xlu0 %v274, 127
      %v405 = vpop.permute.xlu0 %404
      %406 = vrot.lane.b32.xlu0 %v270, 127
      %v407 = vpop.permute.xlu0 %406
      %408 = vrot.lane.b32.xlu0 %v266, 127
      %v409 = vpop.permute.xlu0 %408
      %410 = vrot.lane.b32.xlu0 %v279, 127
      %v411 = vpop.permute.xlu0 %410
      %412 = vrot.lane.b32.xlu0 %v275, 127
      %v413 = vpop.permute.xlu0 %412
      %414 = vrot.lane.b32.xlu0 %v271, 127
      %v415 = vpop.permute.xlu0 %414
      %416 = vrot.lane.b32.xlu0 %v267, 127
      %v417 = vpop.permute.xlu0 %416
      %418 = vrot.lane.b32.xlu0 %v280, 127
      %v419 = vpop.permute.xlu0 %418
      %420 = vrot.lane.b32.xlu0 %v276, 127
      %v421 = vpop.permute.xlu0 %420
      %422 = vrot.lane.b32.xlu0 %v272, 127
      %v423 = vpop.permute.xlu0 %422
      %424 = vrot.lane.b32.xlu0 %v268, 127
      %v425 = vpop.permute.xlu0 %424
      %v426 = vsub.f32 %v363, %v395
      %v427 = vsub.f32 %v365, %v397
      %v428 = vsub.f32 %v367, %v399
      %v429 = vsub.f32 %v369, %v401
      %v430 = vsub.f32 %v371, %v403
      %v431 = vsub.f32 %v373, %v405
      %v432 = vsub.f32 %v375, %v407
      %v433 = vsub.f32 %v377, %v409
      %v434 = vsub.f32 %v379, %v411
      %v435 = vsub.f32 %v381, %v413
      %v436 = vsub.f32 %v383, %v415
      %v437 = vsub.f32 %v385, %v417
      %v438 = vsub.f32 %v387, %v419
      %v439 = vsub.f32 %v389, %v421
      %v440 = vsub.f32 %v391, %v423
      %v441 = vsub.f32 %v393, %v425
      %442 = vrot.lane.b32.xlu0 %v306, 1
      %v443 = vpop.permute.xlu0 %442
      %444 = vrot.lane.b32.xlu0 %v302, 1
      %v445 = vpop.permute.xlu0 %444
      %446 = vrot.lane.b32.xlu0 %v298, 1
      %v447 = vpop.permute.xlu0 %446
      %448 = vrot.lane.b32.xlu0 %v310, 1
      %v449 = vpop.permute.xlu0 %448
      %450 = vrot.lane.b32.xlu0 %v307, 1
      %v451 = vpop.permute.xlu0 %450
      %452 = vrot.lane.b32.xlu0 %v303, 1
      %v453 = vpop.permute.xlu0 %452
      %454 = vrot.lane.b32.xlu0 %v299, 1
      %v455 = vpop.permute.xlu0 %454
      %456 = vrot.lane.b32.xlu0 %v311, 1
      %v457 = vpop.permute.xlu0 %456
      %458 = vrot.lane.b32.xlu0 %v308, 1
      %v459 = vpop.permute.xlu0 %458
      %460 = vrot.lane.b32.xlu0 %v304, 1
      %v461 = vpop.permute.xlu0 %460
      %462 = vrot.lane.b32.xlu0 %v300, 1
      %v463 = vpop.permute.xlu0 %462
      %464 = vrot.lane.b32.xlu0 %v312, 1
      %v465 = vpop.permute.xlu0 %464
      %466 = vrot.lane.b32.xlu0 %v309, 1
      %v467 = vpop.permute.xlu0 %466
      %468 = vrot.lane.b32.xlu0 %v305, 1
      %v469 = vpop.permute.xlu0 %468
      %470 = vrot.lane.b32.xlu0 %v301, 1
      %v471 = vpop.permute.xlu0 %470
      %472 = vrot.lane.b32.xlu0 %v313, 1
      %v473 = vpop.permute.xlu0 %472
      %v474 = vsub.f32 %v426, %v443
      %v475 = vsub.f32 %v427, %v445
      %v476 = vsub.f32 %v428, %v447
      %v477 = vsub.f32 %v429, %v449
      %v478 = vsub.f32 %v430, %v451
      %v479 = vsub.f32 %v431, %v453
      %v480 = vsub.f32 %v432, %v455
      %v481 = vsub.f32 %v433, %v457
      %v482 = vsub.f32 %v434, %v459
      %v483 = vsub.f32 %v435, %v461
      %v484 = vsub.f32 %v436, %v463
      %v485 = vsub.f32 %v437, %v465
      %v486 = vsub.f32 %v438, %v467
      %v487 = vsub.f32 %v439, %v469
      %v488 = vsub.f32 %v440, %v471
      %v489 = vsub.f32 %v441, %v473
      %490 = vrot.lane.b32.xlu0 %v306, 127
      %v491 = vpop.permute.xlu0 %490
      %492 = vrot.lane.b32.xlu0 %v302, 127
      %v493 = vpop.permute.xlu0 %492
      %494 = vrot.lane.b32.xlu0 %v298, 127
      %v495 = vpop.permute.xlu0 %494
      %496 = vrot.lane.b32.xlu0 %v310, 127
      %v497 = vpop.permute.xlu0 %496
      %498 = vrot.lane.b32.xlu0 %v307, 127
      %v499 = vpop.permute.xlu0 %498
      %500 = vrot.lane.b32.xlu0 %v303, 127
      %v501 = vpop.permute.xlu0 %500
      %502 = vrot.lane.b32.xlu0 %v299, 127
      %v503 = vpop.permute.xlu0 %502
      %504 = vrot.lane.b32.xlu0 %v311, 127
      %v505 = vpop.permute.xlu0 %504
      %506 = vrot.lane.b32.xlu0 %v308, 127
      %v507 = vpop.permute.xlu0 %506
      %508 = vrot.lane.b32.xlu0 %v304, 127
      %v509 = vpop.permute.xlu0 %508
      %510 = vrot.lane.b32.xlu0 %v300, 127
      %v511 = vpop.permute.xlu0 %510
      %512 = vrot.lane.b32.xlu0 %v312, 127
      %v513 = vpop.permute.xlu0 %512
      %514 = vrot.lane.b32.xlu0 %v309, 127
      %v515 = vpop.permute.xlu0 %514
      %516 = vrot.lane.b32.xlu0 %v305, 127
      %v517 = vpop.permute.xlu0 %516
      %518 = vrot.lane.b32.xlu0 %v301, 127
      %v519 = vpop.permute.xlu0 %518
      %520 = vrot.lane.b32.xlu0 %v313, 127
      %v521 = vpop.permute.xlu0 %520
      %v522 = vadd.f32 %v474, %v491
      %v523 = vadd.f32 %v475, %v493
      %v524 = vadd.f32 %v476, %v495
      %v525 = vadd.f32 %v477, %v497
      %v526 = vadd.f32 %v478, %v499
      %v527 = vadd.f32 %v479, %v501
      %v528 = vadd.f32 %v480, %v503
      %v529 = vadd.f32 %v481, %v505
      %v530 = vadd.f32 %v482, %v507
      %v531 = vadd.f32 %v483, %v509
      %v532 = vadd.f32 %v484, %v511
      %v533 = vadd.f32 %v485, %v513
      %v534 = vadd.f32 %v486, %v515
      %v535 = vadd.f32 %v487, %v517
      %v536 = vadd.f32 %v488, %v519
      %v537 = vadd.f32 %v489, %v521
      %v538 = vmul.f32 %v522, 0.25
      %v539 = vmul.f32 %v523, 0.25
      %v540 = vmul.f32 %v524, 0.25
      %v541 = vmul.f32 %v525, 0.25
      %v542 = vmul.f32 %v526, 0.25
      %v543 = vmul.f32 %v527, 0.25
      %v544 = vmul.f32 %v528, 0.25
      %v545 = vmul.f32 %v529, 0.25
      %v546 = vmul.f32 %v530, 0.25
      %v547 = vmul.f32 %v531, 0.25
      %v548 = vmul.f32 %v532, 0.25
      %v549 = vmul.f32 %v533, 0.25
      %v550 = vmul.f32 %v534, 0.25
      %v551 = vmul.f32 %v535, 0.25
      %v552 = vmul.f32 %v536, 0.25
      %v553 = vmul.f32 %v537, 0.25
      %554 = vrot.lane.b32.xlu0 %v210, 1
      %v555 = vpop.permute.xlu0 %554
      %556 = vrot.lane.b32.xlu0 %v211, 1
      %v557 = vpop.permute.xlu0 %556
      %558 = vrot.lane.b32.xlu0 %v212, 1
      %v559 = vpop.permute.xlu0 %558
      %560 = vrot.lane.b32.xlu0 %v213, 1
      %v561 = vpop.permute.xlu0 %560
      %562 = vrot.lane.b32.xlu0 %v214, 1
      %v563 = vpop.permute.xlu0 %562
      %564 = vrot.lane.b32.xlu0 %v215, 1
      %v565 = vpop.permute.xlu0 %564
      %566 = vrot.lane.b32.xlu0 %v216, 1
      %v567 = vpop.permute.xlu0 %566
      %568 = vrot.lane.b32.xlu0 %v217, 1
      %v569 = vpop.permute.xlu0 %568
      %570 = vrot.lane.b32.xlu0 %v218, 1
      %v571 = vpop.permute.xlu0 %570
      %572 = vrot.lane.b32.xlu0 %v219, 1
      %v573 = vpop.permute.xlu0 %572
      %574 = vrot.lane.b32.xlu0 %v220, 1
      %v575 = vpop.permute.xlu0 %574
      %576 = vrot.lane.b32.xlu0 %v221, 1
      %v577 = vpop.permute.xlu0 %576
      %578 = vrot.lane.b32.xlu0 %v222, 1
      %v579 = vpop.permute.xlu0 %578
      %580 = vrot.lane.b32.xlu0 %v223, 1
      %v581 = vpop.permute.xlu0 %580
      %582 = vrot.lane.b32.xlu0 %v224, 1
      %v583 = vpop.permute.xlu0 %582
      %584 = vrot.lane.b32.xlu0 %v225, 1
      %v585 = vpop.permute.xlu0 %584
      %586 = vrot.lane.b32.xlu0 %v210, 127
      %v587 = vpop.permute.xlu0 %586
      %588 = vrot.lane.b32.xlu0 %v211, 127
      %v589 = vpop.permute.xlu0 %588
      %590 = vrot.lane.b32.xlu0 %v212, 127
      %v591 = vpop.permute.xlu0 %590
      %592 = vrot.lane.b32.xlu0 %v213, 127
      %v593 = vpop.permute.xlu0 %592
      %594 = vrot.lane.b32.xlu0 %v214, 127
      %v595 = vpop.permute.xlu0 %594
      %596 = vrot.lane.b32.xlu0 %v215, 127
      %v597 = vpop.permute.xlu0 %596
      %598 = vrot.lane.b32.xlu0 %v216, 127
      %v599 = vpop.permute.xlu0 %598
      %600 = vrot.lane.b32.xlu0 %v217, 127
      %v601 = vpop.permute.xlu0 %600
      %602 = vrot.lane.b32.xlu0 %v218, 127
      %v603 = vpop.permute.xlu0 %602
      %604 = vrot.lane.b32.xlu0 %v219, 127
      %v605 = vpop.permute.xlu0 %604
      %606 = vrot.lane.b32.xlu0 %v220, 127
      %v607 = vpop.permute.xlu0 %606
      %608 = vrot.lane.b32.xlu0 %v221, 127
      %v609 = vpop.permute.xlu0 %608
      %610 = vrot.lane.b32.xlu0 %v222, 127
      %v611 = vpop.permute.xlu0 %610
      %612 = vrot.lane.b32.xlu0 %v223, 127
      %v613 = vpop.permute.xlu0 %612
      %614 = vrot.lane.b32.xlu0 %v224, 127
      %v615 = vpop.permute.xlu0 %614
      %616 = vrot.lane.b32.xlu0 %v225, 127
      %v617 = vpop.permute.xlu0 %616
      %v618 = vadd.f32 %v555, %v587
      %v619 = vadd.f32 %v557, %v589
      %v620 = vadd.f32 %v559, %v591
      %v621 = vadd.f32 %v561, %v593
      %v622 = vadd.f32 %v563, %v595
      %v623 = vadd.f32 %v565, %v597
      %v624 = vadd.f32 %v567, %v599
      %v625 = vadd.f32 %v569, %v601
      %v626 = vadd.f32 %v571, %v603
      %v627 = vadd.f32 %v573, %v605
      %v628 = vadd.f32 %v575, %v607
      %v629 = vadd.f32 %v577, %v609
      %v630 = vadd.f32 %v579, %v611
      %v631 = vadd.f32 %v581, %v613
      %v632 = vadd.f32 %v583, %v615
      %v633 = vadd.f32 %v585, %v617
      %v634 = vsub.f32 %v618, %v330
      %v635 = vsub.f32 %v619, %v331
      %v636 = vsub.f32 %v620, %v332
      %v637 = vsub.f32 %v621, %v333
      %v638 = vsub.f32 %v622, %v334
      %v639 = vsub.f32 %v623, %v335
      %v640 = vsub.f32 %v624, %v336
      %v641 = vsub.f32 %v625, %v337
      %v642 = vsub.f32 %v626, %v338
      %v643 = vsub.f32 %v627, %v339
      %v644 = vsub.f32 %v628, %v340
      %v645 = vsub.f32 %v629, %v341
      %v646 = vsub.f32 %v630, %v342
      %v647 = vsub.f32 %v631, %v343
      %v648 = vsub.f32 %v632, %v344
      %v649 = vsub.f32 %v633, %v345
      %v650 = vmul.f32 %v346, %v634
      %v651 = vmul.f32 %v347, %v635
      %v652 = vmul.f32 %v348, %v636
      %v653 = vmul.f32 %v349, %v637
      %v654 = vmul.f32 %v350, %v638
      %v655 = vmul.f32 %v351, %v639
      %v656 = vmul.f32 %v352, %v640
      %v657 = vmul.f32 %v353, %v641
      %v658 = vmul.f32 %v354, %v642
      %v659 = vmul.f32 %v355, %v643
      %v660 = vmul.f32 %v356, %v644
      %v661 = vmul.f32 %v357, %v645
      %v662 = vmul.f32 %v358, %v646
      %v663 = vmul.f32 %v359, %v647
      %v664 = vmul.f32 %v360, %v648
      %v665 = vmul.f32 %v361, %v649
      %v666 = vmul.f32 %v538, %v538
      %v667 = vmul.f32 %v539, %v539
      %v668 = vmul.f32 %v540, %v540
      %v669 = vmul.f32 %v541, %v541
      %v670 = vmul.f32 %v542, %v542
      %v671 = vmul.f32 %v543, %v543
      %v672 = vmul.f32 %v544, %v544
      %v673 = vmul.f32 %v545, %v545
      %v674 = vmul.f32 %v546, %v546
      %v675 = vmul.f32 %v547, %v547
      %v676 = vmul.f32 %v548, %v548
      %v677 = vmul.f32 %v549, %v549
      %v678 = vmul.f32 %v550, %v550
      %v679 = vmul.f32 %v551, %v551
      %v680 = vmul.f32 %v552, %v552
      %v681 = vmul.f32 %v553, %v553
      %v682 = vsub.f32 %v650, %v666
      %v683 = vsub.f32 %v651, %v667
      %v684 = vsub.f32 %v652, %v668
      %v685 = vsub.f32 %v653, %v669
      %v686 = vsub.f32 %v654, %v670
      %v687 = vsub.f32 %v655, %v671
      %v688 = vsub.f32 %v656, %v672
      %v689 = vsub.f32 %v657, %v673
      %v690 = vsub.f32 %v658, %v674
      %v691 = vsub.f32 %v659, %v675
      %v692 = vsub.f32 %v660, %v676
      %v693 = vsub.f32 %v661, %v677
      %v694 = vsub.f32 %v662, %v678
      %v695 = vsub.f32 %v663, %v679
      %v696 = vsub.f32 %v664, %v680
      %v697 = vsub.f32 %v665, %v681
      %v698 = vadd.f32 %v346, %v634
      %v699 = vadd.f32 %v347, %v635
      %v700 = vadd.f32 %v348, %v636
      %v701 = vadd.f32 %v349, %v637
      %v702 = vadd.f32 %v350, %v638
      %v703 = vadd.f32 %v351, %v639
      %v704 = vadd.f32 %v352, %v640
      %v705 = vadd.f32 %v353, %v641
      %v706 = vadd.f32 %v354, %v642
      %v707 = vadd.f32 %v355, %v643
      %v708 = vadd.f32 %v356, %v644
      %v709 = vadd.f32 %v357, %v645
      %v710 = vadd.f32 %v358, %v646
      %v711 = vadd.f32 %v359, %v647
      %v712 = vadd.f32 %v360, %v648
      %v713 = vadd.f32 %v361, %v649
      %v714 = vmul.f32 %v698, %v698
      %v715 = vmul.f32 %v699, %v699
      %v716 = vmul.f32 %v700, %v700
      %v717 = vmul.f32 %v701, %v701
      %v718 = vmul.f32 %v702, %v702
      %v719 = vmul.f32 %v703, %v703
      %v720 = vmul.f32 %v704, %v704
      %v721 = vmul.f32 %v705, %v705
      %v722 = vmul.f32 %v706, %v706
      %v723 = vmul.f32 %v707, %v707
      %v724 = vmul.f32 %v708, %v708
      %v725 = vmul.f32 %v709, %v709
      %v726 = vmul.f32 %v710, %v710
      %v727 = vmul.f32 %v711, %v711
      %v728 = vmul.f32 %v712, %v712
      %v729 = vmul.f32 %v713, %v713
      %v730 = vmul.f32 %v682, 7.2
      %v731 = vmul.f32 %v683, 7.2
      %v732 = vmul.f32 %v684, 7.2
      %v733 = vmul.f32 %v685, 7.2
      %v734 = vmul.f32 %v686, 7.2
      %v735 = vmul.f32 %v687, 7.2
      %v736 = vmul.f32 %v688, 7.2
      %v737 = vmul.f32 %v689, 7.2
      %v738 = vmul.f32 %v690, 7.2
      %v739 = vmul.f32 %v691, 7.2
      %v740 = vmul.f32 %v692, 7.2
      %v741 = vmul.f32 %v693, 7.2
      %v742 = vmul.f32 %v694, 7.2
      %v743 = vmul.f32 %v695, 7.2
      %v744 = vmul.f32 %v696, 7.2
      %v745 = vmul.f32 %v697, 7.2
      %vm746 = vcmp.le.f32.partialorder %v714, %v730
      %vm747 = vcmp.le.f32.partialorder %v715, %v731
      %vm748 = vcmp.le.f32.partialorder %v716, %v732
      %vm749 = vcmp.le.f32.partialorder %v717, %v733
      %vm750 = vcmp.le.f32.partialorder %v718, %v734
      %vm751 = vcmp.le.f32.partialorder %v719, %v735
      %vm752 = vcmp.le.f32.partialorder %v720, %v736
      %vm753 = vcmp.le.f32.partialorder %v721, %v737
      %vm754 = vcmp.le.f32.partialorder %v722, %v738
      %vm755 = vcmp.le.f32.partialorder %v723, %v739
      %vm756 = vcmp.le.f32.partialorder %v724, %v740
      %vm757 = vcmp.le.f32.partialorder %v725, %v741
      %vm758 = vcmp.le.f32.partialorder %v726, %v742
      %vm759 = vcmp.le.f32.partialorder %v727, %v743
      %vm760 = vcmp.le.f32.partialorder %v728, %v744
      %vm761 = vcmp.le.f32.partialorder %v729, %v745
      %vm762 = vcmp.gt.f32.partialorder %v682, 0.0
      %vm763 = vcmp.gt.f32.partialorder %v683, 0.0
      %vm764 = vcmp.gt.f32.partialorder %v684, 0.0
      %vm765 = vcmp.gt.f32.partialorder %v685, 0.0
      %vm766 = vcmp.gt.f32.partialorder %v686, 0.0
      %vm767 = vcmp.gt.f32.partialorder %v687, 0.0
      %vm768 = vcmp.gt.f32.partialorder %v688, 0.0
      %vm769 = vcmp.gt.f32.partialorder %v689, 0.0
      %vm770 = vcmp.gt.f32.partialorder %v690, 0.0
      %vm771 = vcmp.gt.f32.partialorder %v691, 0.0
      %vm772 = vcmp.gt.f32.partialorder %v692, 0.0
      %vm773 = vcmp.gt.f32.partialorder %v693, 0.0
      %vm774 = vcmp.gt.f32.partialorder %v694, 0.0
      %vm775 = vcmp.gt.f32.partialorder %v695, 0.0
      %vm776 = vcmp.gt.f32.partialorder %v696, 0.0
      %vm777 = vcmp.gt.f32.partialorder %v697, 0.0
      %vm778 = vmand %vm746, %vm762
      %vm779 = vmand %vm747, %vm763
      %vm780 = vmand %vm748, %vm764
      %vm781 = vmand %vm749, %vm765
      %vm782 = vmand %vm750, %vm766
      %vm783 = vmand %vm751, %vm767
      %vm784 = vmand %vm752, %vm768
      %vm785 = vmand %vm753, %vm769
      %vm786 = vmand %vm754, %vm770
      %vm787 = vmand %vm755, %vm771
      %vm788 = vmand %vm756, %vm772
      %vm789 = vmand %vm757, %vm773
      %vm790 = vmand %vm758, %vm774
      %vm791 = vmand %vm759, %vm775
      %vm792 = vmand %vm760, %vm776
      %vm793 = vmand %vm761, %vm777
      %v794 = vadd.s32 %v263, 8
      %v795 = vadd.s32 %v263, 16
      %v796 = vadd.s32 %v263, 24
      %v797 = vlaneseq
      %v798 = vand.u32 %v797, 127
      %vm799 = vcmp.ge.s32.totalorder %v263, 16
      %vm800 = vcmp.ge.s32.totalorder %v794, 16
      %vm801 = vcmp.ge.s32.totalorder %v795, 16
      %vm802 = vcmp.ge.s32.totalorder %v796, 16
      %vm803 = vcmp.ge.s32.totalorder %v798, 16
      %vm804 = vmor %vm799, %vm803
      %vm805 = vmor %vm800, %vm803
      %vm806 = vmor %vm801, %vm803
      %vm807 = vmor %vm802, %vm803
      %v808 = vsel %vm804, 1, 0
      %v809 = vsel %vm805, 1, 0
      %v810 = vsel %vm806, 1, 0
      %v811 = vsel %vm807, 1, 0
      %vm812 = vcmp.eq.s32.totalorder %v808, 1
      %vm813 = vcmp.eq.s32.totalorder %v809, 1
      %vm814 = vcmp.eq.s32.totalorder %v810, 1
      %vm815 = vcmp.eq.s32.totalorder %v811, 1
      %v816 = vsel %vm812, -inf, %v210
      %v817 = vsel %vm813, -inf, %v211
      %v818 = vsel %vm814, -inf, %v212
      %v819 = vsel %vm815, -inf, %v213
      %v820 = vsel %vm812, -inf, %v214
      %v821 = vsel %vm813, -inf, %v215
      %v822 = vsel %vm814, -inf, %v216
      %v823 = vsel %vm815, -inf, %v217
      %v824 = vsel %vm812, -inf, %v218
      %v825 = vsel %vm813, -inf, %v219
      %v826 = vsel %vm814, -inf, %v220
      %v827 = vsel %vm815, -inf, %v221
      %v828 = vsel %vm812, -inf, %v222
      %v829 = vsel %vm813, -inf, %v223
      %v830 = vsel %vm814, -inf, %v224
      %v831 = vsel %vm815, -inf, %v225
      %v832 = vrot.slane %v816, 7
      %v833 = vrot.slane %v820, 7
      %v834 = vrot.slane %v824, 7
      %v835 = vrot.slane %v828, 7
      %v836 = vrot.slane %v817, 7
      %v837 = vrot.slane %v821, 7
      %v838 = vrot.slane %v825, 7
      %v839 = vrot.slane %v829, 7
      %v840 = vrot.slane %v818, 7
      %v841 = vrot.slane %v822, 7
      %v842 = vrot.slane %v826, 7
      %v843 = vrot.slane %v830, 7
      %v844 = vrot.slane %v819, 7
      %v845 = vrot.slane %v823, 7
      %v846 = vrot.slane %v827, 7
      %v847 = vrot.slane %v831, 7
      %v848 = vsel %vm264, %v840, %v844
      %v849 = vsel %vm264, %v841, %v845
      %v850 = vsel %vm264, %v842, %v846
      %v851 = vsel %vm264, %v843, %v847
      %v852 = vsel %vm264, %v836, %v840
      %v853 = vsel %vm264, %v837, %v841
      %v854 = vsel %vm264, %v838, %v842
      %v855 = vsel %vm264, %v839, %v843
      %v856 = vsel %vm264, %v832, %v836
      %v857 = vsel %vm264, %v833, %v837
      %v858 = vsel %vm264, %v834, %v838
      %v859 = vsel %vm264, %v835, %v839
      %v860 = vsel %vm264, %v844, %v832
      %v861 = vsel %vm264, %v845, %v833
      %v862 = vsel %vm264, %v846, %v834
      %v863 = vsel %vm264, %v847, %v835
      %v864 = vrot.slane %v816, 1
      %v865 = vrot.slane %v820, 1
      %v866 = vrot.slane %v824, 1
      %v867 = vrot.slane %v828, 1
      %v868 = vrot.slane %v817, 1
      %v869 = vrot.slane %v821, 1
      %v870 = vrot.slane %v825, 1
      %v871 = vrot.slane %v829, 1
      %v872 = vrot.slane %v818, 1
      %v873 = vrot.slane %v822, 1
      %v874 = vrot.slane %v826, 1
      %v875 = vrot.slane %v830, 1
      %v876 = vrot.slane %v819, 1
      %v877 = vrot.slane %v823, 1
      %v878 = vrot.slane %v827, 1
      %v879 = vrot.slane %v831, 1
      %v880 = vsel %vm297, %v872, %v876
      %v881 = vsel %vm297, %v873, %v877
      %v882 = vsel %vm297, %v874, %v878
      %v883 = vsel %vm297, %v875, %v879
      %v884 = vsel %vm297, %v868, %v872
      %v885 = vsel %vm297, %v869, %v873
      %v886 = vsel %vm297, %v870, %v874
      %v887 = vsel %vm297, %v871, %v875
      %v888 = vsel %vm297, %v864, %v868
      %v889 = vsel %vm297, %v865, %v869
      %v890 = vsel %vm297, %v866, %v870
      %v891 = vsel %vm297, %v867, %v871
      %v892 = vsel %vm297, %v876, %v864
      %v893 = vsel %vm297, %v877, %v865
      %v894 = vsel %vm297, %v878, %v866
      %v895 = vsel %vm297, %v879, %v867
      %v896 = vmax.f32 %v860, %v888
      %v897 = vmax.f32 %v856, %v884
      %v898 = vmax.f32 %v852, %v880
      %v899 = vmax.f32 %v848, %v892
      %v900 = vmax.f32 %v861, %v889
      %v901 = vmax.f32 %v857, %v885
      %v902 = vmax.f32 %v853, %v881
      %v903 = vmax.f32 %v849, %v893
      %v904 = vmax.f32 %v862, %v890
      %v905 = vmax.f32 %v858, %v886
      %v906 = vmax.f32 %v854, %v882
      %v907 = vmax.f32 %v850, %v894
      %v908 = vmax.f32 %v863, %v891
      %v909 = vmax.f32 %v859, %v887
      %v910 = vmax.f32 %v855, %v883
      %v911 = vmax.f32 %v851, %v895
      %v912 = vmax.f32 %v210, %v896
      %v913 = vmax.f32 %v211, %v897
      %v914 = vmax.f32 %v212, %v898
      %v915 = vmax.f32 %v213, %v899
      %v916 = vmax.f32 %v214, %v900
      %v917 = vmax.f32 %v215, %v901
      %v918 = vmax.f32 %v216, %v902
      %v919 = vmax.f32 %v217, %v903
      %v920 = vmax.f32 %v218, %v904
      %v921 = vmax.f32 %v219, %v905
      %v922 = vmax.f32 %v220, %v906
      %v923 = vmax.f32 %v221, %v907
      %v924 = vmax.f32 %v222, %v908
      %v925 = vmax.f32 %v223, %v909
      %v926 = vmax.f32 %v224, %v910
      %v927 = vmax.f32 %v225, %v911
      %928 = vrot.lane.b32.xlu0 %v860, 1
      %v929 = vpop.permute.xlu0 %928
      %930 = vrot.lane.b32.xlu0 %v856, 1
      %v931 = vpop.permute.xlu0 %930
      %932 = vrot.lane.b32.xlu0 %v852, 1
      %v933 = vpop.permute.xlu0 %932
      %934 = vrot.lane.b32.xlu0 %v848, 1
      %v935 = vpop.permute.xlu0 %934
      %936 = vrot.lane.b32.xlu0 %v861, 1
      %v937 = vpop.permute.xlu0 %936
      %938 = vrot.lane.b32.xlu0 %v857, 1
      %v939 = vpop.permute.xlu0 %938
      %940 = vrot.lane.b32.xlu0 %v853, 1
      %v941 = vpop.permute.xlu0 %940
      %942 = vrot.lane.b32.xlu0 %v849, 1
      %v943 = vpop.permute.xlu0 %942
      %944 = vrot.lane.b32.xlu0 %v862, 1
      %v945 = vpop.permute.xlu0 %944
      %946 = vrot.lane.b32.xlu0 %v858, 1
      %v947 = vpop.permute.xlu0 %946
      %948 = vrot.lane.b32.xlu0 %v854, 1
      %v949 = vpop.permute.xlu0 %948
      %950 = vrot.lane.b32.xlu0 %v850, 1
      %v951 = vpop.permute.xlu0 %950
      %952 = vrot.lane.b32.xlu0 %v863, 1
      %v953 = vpop.permute.xlu0 %952
      %954 = vrot.lane.b32.xlu0 %v859, 1
      %v955 = vpop.permute.xlu0 %954
      %956 = vrot.lane.b32.xlu0 %v855, 1
      %v957 = vpop.permute.xlu0 %956
      %958 = vrot.lane.b32.xlu0 %v851, 1
      %v959 = vpop.permute.xlu0 %958
      %960 = vrot.lane.b32.xlu0 %v860, 127
      %v961 = vpop.permute.xlu0 %960
      %962 = vrot.lane.b32.xlu0 %v856, 127
      %v963 = vpop.permute.xlu0 %962
      %964 = vrot.lane.b32.xlu0 %v852, 127
      %v965 = vpop.permute.xlu0 %964
      %966 = vrot.lane.b32.xlu0 %v848, 127
      %v967 = vpop.permute.xlu0 %966
      %968 = vrot.lane.b32.xlu0 %v861, 127
      %v969 = vpop.permute.xlu0 %968
      %970 = vrot.lane.b32.xlu0 %v857, 127
      %v971 = vpop.permute.xlu0 %970
      %972 = vrot.lane.b32.xlu0 %v853, 127
      %v973 = vpop.permute.xlu0 %972
      %974 = vrot.lane.b32.xlu0 %v849, 127
      %v975 = vpop.permute.xlu0 %974
      %976 = vrot.lane.b32.xlu0 %v862, 127
      %v977 = vpop.permute.xlu0 %976
      %978 = vrot.lane.b32.xlu0 %v858, 127
      %v979 = vpop.permute.xlu0 %978
      %980 = vrot.lane.b32.xlu0 %v854, 127
      %v981 = vpop.permute.xlu0 %980
      %982 = vrot.lane.b32.xlu0 %v850, 127
      %v983 = vpop.permute.xlu0 %982
      %984 = vrot.lane.b32.xlu0 %v863, 127
      %v985 = vpop.permute.xlu0 %984
      %986 = vrot.lane.b32.xlu0 %v859, 127
      %v987 = vpop.permute.xlu0 %986
      %988 = vrot.lane.b32.xlu0 %v855, 127
      %v989 = vpop.permute.xlu0 %988
      %990 = vrot.lane.b32.xlu0 %v851, 127
      %v991 = vpop.permute.xlu0 %990
      %v992 = vmax.f32 %v929, %v961
      %v993 = vmax.f32 %v931, %v963
      %v994 = vmax.f32 %v933, %v965
      %v995 = vmax.f32 %v935, %v967
      %v996 = vmax.f32 %v937, %v969
      %v997 = vmax.f32 %v939, %v971
      %v998 = vmax.f32 %v941, %v973
      %v999 = vmax.f32 %v943, %v975
      %v1000 = vmax.f32 %v945, %v977
      %v1001 = vmax.f32 %v947, %v979
      %v1002 = vmax.f32 %v949, %v981
      %v1003 = vmax.f32 %v951, %v983
      %v1004 = vmax.f32 %v953, %v985
      %v1005 = vmax.f32 %v955, %v987
      %v1006 = vmax.f32 %v957, %v989
      %v1007 = vmax.f32 %v959, %v991
      %v1008 = vmax.f32 %v912, %v992
      %v1009 = vmax.f32 %v913, %v993
      %v1010 = vmax.f32 %v914, %v994
      %v1011 = vmax.f32 %v915, %v995
      %v1012 = vmax.f32 %v916, %v996
      %v1013 = vmax.f32 %v917, %v997
      %v1014 = vmax.f32 %v918, %v998
      %v1015 = vmax.f32 %v919, %v999
      %v1016 = vmax.f32 %v920, %v1000
      %v1017 = vmax.f32 %v921, %v1001
      %v1018 = vmax.f32 %v922, %v1002
      %v1019 = vmax.f32 %v923, %v1003
      %v1020 = vmax.f32 %v924, %v1004
      %v1021 = vmax.f32 %v925, %v1005
      %v1022 = vmax.f32 %v926, %v1006
      %v1023 = vmax.f32 %v927, %v1007
      %1024 = vrot.lane.b32.xlu0 %v888, 1
      %v1025 = vpop.permute.xlu0 %1024
      %1026 = vrot.lane.b32.xlu0 %v884, 1
      %v1027 = vpop.permute.xlu0 %1026
      %1028 = vrot.lane.b32.xlu0 %v880, 1
      %v1029 = vpop.permute.xlu0 %1028
      %1030 = vrot.lane.b32.xlu0 %v892, 1
      %v1031 = vpop.permute.xlu0 %1030
      %1032 = vrot.lane.b32.xlu0 %v889, 1
      %v1033 = vpop.permute.xlu0 %1032
      %1034 = vrot.lane.b32.xlu0 %v885, 1
      %v1035 = vpop.permute.xlu0 %1034
      %1036 = vrot.lane.b32.xlu0 %v881, 1
      %v1037 = vpop.permute.xlu0 %1036
      %1038 = vrot.lane.b32.xlu0 %v893, 1
      %v1039 = vpop.permute.xlu0 %1038
      %1040 = vrot.lane.b32.xlu0 %v890, 1
      %v1041 = vpop.permute.xlu0 %1040
      %1042 = vrot.lane.b32.xlu0 %v886, 1
      %v1043 = vpop.permute.xlu0 %1042
      %1044 = vrot.lane.b32.xlu0 %v882, 1
      %v1045 = vpop.permute.xlu0 %1044
      %1046 = vrot.lane.b32.xlu0 %v894, 1
      %v1047 = vpop.permute.xlu0 %1046
      %1048 = vrot.lane.b32.xlu0 %v891, 1
      %v1049 = vpop.permute.xlu0 %1048
      %1050 = vrot.lane.b32.xlu0 %v887, 1
      %v1051 = vpop.permute.xlu0 %1050
      %1052 = vrot.lane.b32.xlu0 %v883, 1
      %v1053 = vpop.permute.xlu0 %1052
      %1054 = vrot.lane.b32.xlu0 %v895, 1
      %v1055 = vpop.permute.xlu0 %1054
      %1056 = vrot.lane.b32.xlu0 %v888, 127
      %v1057 = vpop.permute.xlu0 %1056
      %1058 = vrot.lane.b32.xlu0 %v884, 127
      %v1059 = vpop.permute.xlu0 %1058
      %1060 = vrot.lane.b32.xlu0 %v880, 127
      %v1061 = vpop.permute.xlu0 %1060
      %1062 = vrot.lane.b32.xlu0 %v892, 127
      %v1063 = vpop.permute.xlu0 %1062
      %1064 = vrot.lane.b32.xlu0 %v889, 127
      %v1065 = vpop.permute.xlu0 %1064
      %1066 = vrot.lane.b32.xlu0 %v885, 127
      %v1067 = vpop.permute.xlu0 %1066
      %1068 = vrot.lane.b32.xlu0 %v881, 127
      %v1069 = vpop.permute.xlu0 %1068
      %1070 = vrot.lane.b32.xlu0 %v893, 127
      %v1071 = vpop.permute.xlu0 %1070
      %1072 = vrot.lane.b32.xlu0 %v890, 127
      %v1073 = vpop.permute.xlu0 %1072
      %1074 = vrot.lane.b32.xlu0 %v886, 127
      %v1075 = vpop.permute.xlu0 %1074
      %1076 = vrot.lane.b32.xlu0 %v882, 127
      %v1077 = vpop.permute.xlu0 %1076
      %1078 = vrot.lane.b32.xlu0 %v894, 127
      %v1079 = vpop.permute.xlu0 %1078
      %1080 = vrot.lane.b32.xlu0 %v891, 127
      %v1081 = vpop.permute.xlu0 %1080
      %1082 = vrot.lane.b32.xlu0 %v887, 127
      %v1083 = vpop.permute.xlu0 %1082
      %1084 = vrot.lane.b32.xlu0 %v883, 127
      %v1085 = vpop.permute.xlu0 %1084
      %1086 = vrot.lane.b32.xlu0 %v895, 127
      %v1087 = vpop.permute.xlu0 %1086
      %v1088 = vmax.f32 %v1025, %v1057
      %v1089 = vmax.f32 %v1027, %v1059
      %v1090 = vmax.f32 %v1029, %v1061
      %v1091 = vmax.f32 %v1031, %v1063
      %v1092 = vmax.f32 %v1033, %v1065
      %v1093 = vmax.f32 %v1035, %v1067
      %v1094 = vmax.f32 %v1037, %v1069
      %v1095 = vmax.f32 %v1039, %v1071
      %v1096 = vmax.f32 %v1041, %v1073
      %v1097 = vmax.f32 %v1043, %v1075
      %v1098 = vmax.f32 %v1045, %v1077
      %v1099 = vmax.f32 %v1047, %v1079
      %v1100 = vmax.f32 %v1049, %v1081
      %v1101 = vmax.f32 %v1051, %v1083
      %v1102 = vmax.f32 %v1053, %v1085
      %v1103 = vmax.f32 %v1055, %v1087
      %v1104 = vmax.f32 %v1008, %v1088
      %v1105 = vmax.f32 %v1009, %v1089
      %v1106 = vmax.f32 %v1010, %v1090
      %v1107 = vmax.f32 %v1011, %v1091
      %v1108 = vmax.f32 %v1012, %v1092
      %v1109 = vmax.f32 %v1013, %v1093
      %v1110 = vmax.f32 %v1014, %v1094
      %v1111 = vmax.f32 %v1015, %v1095
      %v1112 = vmax.f32 %v1016, %v1096
      %v1113 = vmax.f32 %v1017, %v1097
      %v1114 = vmax.f32 %v1018, %v1098
      %v1115 = vmax.f32 %v1019, %v1099
      %v1116 = vmax.f32 %v1020, %v1100
      %v1117 = vmax.f32 %v1021, %v1101
      %v1118 = vmax.f32 %v1022, %v1102
      %v1119 = vmax.f32 %v1023, %v1103
      %1120 = vrot.lane.b32.xlu0 %v816, 1
      %v1121 = vpop.permute.xlu0 %1120
      %1122 = vrot.lane.b32.xlu0 %v817, 1
      %v1123 = vpop.permute.xlu0 %1122
      %1124 = vrot.lane.b32.xlu0 %v818, 1
      %v1125 = vpop.permute.xlu0 %1124
      %1126 = vrot.lane.b32.xlu0 %v819, 1
      %v1127 = vpop.permute.xlu0 %1126
      %1128 = vrot.lane.b32.xlu0 %v820, 1
      %v1129 = vpop.permute.xlu0 %1128
      %1130 = vrot.lane.b32.xlu0 %v821, 1
      %v1131 = vpop.permute.xlu0 %1130
      %1132 = vrot.lane.b32.xlu0 %v822, 1
      %v1133 = vpop.permute.xlu0 %1132
      %1134 = vrot.lane.b32.xlu0 %v823, 1
      %v1135 = vpop.permute.xlu0 %1134
      %1136 = vrot.lane.b32.xlu0 %v824, 1
      %v1137 = vpop.permute.xlu0 %1136
      %1138 = vrot.lane.b32.xlu0 %v825, 1
      %v1139 = vpop.permute.xlu0 %1138
      %1140 = vrot.lane.b32.xlu0 %v826, 1
      %v1141 = vpop.permute.xlu0 %1140
      %1142 = vrot.lane.b32.xlu0 %v827, 1
      %v1143 = vpop.permute.xlu0 %1142
      %1144 = vrot.lane.b32.xlu0 %v828, 1
      %v1145 = vpop.permute.xlu0 %1144
      %1146 = vrot.lane.b32.xlu0 %v829, 1
      %v1147 = vpop.permute.xlu0 %1146
      %1148 = vrot.lane.b32.xlu0 %v830, 1
      %v1149 = vpop.permute.xlu0 %1148
      %1150 = vrot.lane.b32.xlu0 %v831, 1
      %v1151 = vpop.permute.xlu0 %1150
      %1152 = vrot.lane.b32.xlu0 %v816, 127
      %v1153 = vpop.permute.xlu0 %1152
      %1154 = vrot.lane.b32.xlu0 %v817, 127
      %v1155 = vpop.permute.xlu0 %1154
      %1156 = vrot.lane.b32.xlu0 %v818, 127
      %v1157 = vpop.permute.xlu0 %1156
      %1158 = vrot.lane.b32.xlu0 %v819, 127
      %v1159 = vpop.permute.xlu0 %1158
      %1160 = vrot.lane.b32.xlu0 %v820, 127
      %v1161 = vpop.permute.xlu0 %1160
      %1162 = vrot.lane.b32.xlu0 %v821, 127
      %v1163 = vpop.permute.xlu0 %1162
      %1164 = vrot.lane.b32.xlu0 %v822, 127
      %v1165 = vpop.permute.xlu0 %1164
      %1166 = vrot.lane.b32.xlu0 %v823, 127
      %v1167 = vpop.permute.xlu0 %1166
      %1168 = vrot.lane.b32.xlu0 %v824, 127
      %v1169 = vpop.permute.xlu0 %1168
      %1170 = vrot.lane.b32.xlu0 %v825, 127
      %v1171 = vpop.permute.xlu0 %1170
      %1172 = vrot.lane.b32.xlu0 %v826, 127
      %v1173 = vpop.permute.xlu0 %1172
      %1174 = vrot.lane.b32.xlu0 %v827, 127
      %v1175 = vpop.permute.xlu0 %1174
      %1176 = vrot.lane.b32.xlu0 %v828, 127
      %v1177 = vpop.permute.xlu0 %1176
      %1178 = vrot.lane.b32.xlu0 %v829, 127
      %v1179 = vpop.permute.xlu0 %1178
      %1180 = vrot.lane.b32.xlu0 %v830, 127
      %v1181 = vpop.permute.xlu0 %1180
      %1182 = vrot.lane.b32.xlu0 %v831, 127
      %v1183 = vpop.permute.xlu0 %1182
      %v1184 = vmax.f32 %v1121, %v1153
      %v1185 = vmax.f32 %v1123, %v1155
      %v1186 = vmax.f32 %v1125, %v1157
      %v1187 = vmax.f32 %v1127, %v1159
      %v1188 = vmax.f32 %v1129, %v1161
      %v1189 = vmax.f32 %v1131, %v1163
      %v1190 = vmax.f32 %v1133, %v1165
      %v1191 = vmax.f32 %v1135, %v1167
      %v1192 = vmax.f32 %v1137, %v1169
      %v1193 = vmax.f32 %v1139, %v1171
      %v1194 = vmax.f32 %v1141, %v1173
      %v1195 = vmax.f32 %v1143, %v1175
      %v1196 = vmax.f32 %v1145, %v1177
      %v1197 = vmax.f32 %v1147, %v1179
      %v1198 = vmax.f32 %v1149, %v1181
      %v1199 = vmax.f32 %v1151, %v1183
      %v1200 = vmax.f32 %v1104, %v1184
      %v1201 = vmax.f32 %v1105, %v1185
      %v1202 = vmax.f32 %v1106, %v1186
      %v1203 = vmax.f32 %v1107, %v1187
      %v1204 = vmax.f32 %v1108, %v1188
      %v1205 = vmax.f32 %v1109, %v1189
      %v1206 = vmax.f32 %v1110, %v1190
      %v1207 = vmax.f32 %v1111, %v1191
      %v1208 = vmax.f32 %v1112, %v1192
      %v1209 = vmax.f32 %v1113, %v1193
      %v1210 = vmax.f32 %v1114, %v1194
      %v1211 = vmax.f32 %v1115, %v1195
      %v1212 = vmax.f32 %v1116, %v1196
      %v1213 = vmax.f32 %v1117, %v1197
      %v1214 = vmax.f32 %v1118, %v1198
      %v1215 = vmax.f32 %v1119, %v1199
      %vm1216 = vcmp.eq.f32.partialorder %v210, %v1200
      %vm1217 = vcmp.eq.f32.partialorder %v211, %v1201
      %vm1218 = vcmp.eq.f32.partialorder %v212, %v1202
      %vm1219 = vcmp.eq.f32.partialorder %v213, %v1203
      %vm1220 = vcmp.eq.f32.partialorder %v214, %v1204
      %vm1221 = vcmp.eq.f32.partialorder %v215, %v1205
      %vm1222 = vcmp.eq.f32.partialorder %v216, %v1206
      %vm1223 = vcmp.eq.f32.partialorder %v217, %v1207
      %vm1224 = vcmp.eq.f32.partialorder %v218, %v1208
      %vm1225 = vcmp.eq.f32.partialorder %v219, %v1209
      %vm1226 = vcmp.eq.f32.partialorder %v220, %v1210
      %vm1227 = vcmp.eq.f32.partialorder %v221, %v1211
      %vm1228 = vcmp.eq.f32.partialorder %v222, %v1212
      %vm1229 = vcmp.eq.f32.partialorder %v223, %v1213
      %vm1230 = vcmp.eq.f32.partialorder %v224, %v1214
      %vm1231 = vcmp.eq.f32.partialorder %v225, %v1215
      %vm1232 = vmand %vm230, %vm1216
      %vm1233 = vmand %vm231, %vm1217
      %vm1234 = vmand %vm232, %vm1218
      %vm1235 = vmand %vm233, %vm1219
      %vm1236 = vmand %vm234, %vm1220
      %vm1237 = vmand %vm235, %vm1221
      %vm1238 = vmand %vm236, %vm1222
      %vm1239 = vmand %vm237, %vm1223
      %vm1240 = vmand %vm238, %vm1224
      %vm1241 = vmand %vm239, %vm1225
      %vm1242 = vmand %vm240, %vm1226
      %vm1243 = vmand %vm241, %vm1227
      %vm1244 = vmand %vm242, %vm1228
      %vm1245 = vmand %vm243, %vm1229
      %vm1246 = vmand %vm244, %vm1230
      %vm1247 = vmand %vm245, %vm1231
      %vm1248 = vmand %vm1232, %vm778
      %vm1249 = vmand %vm1233, %vm779
      %vm1250 = vmand %vm1234, %vm780
      %vm1251 = vmand %vm1235, %vm781
      %vm1252 = vmand %vm1236, %vm782
      %vm1253 = vmand %vm1237, %vm783
      %vm1254 = vmand %vm1238, %vm784
      %vm1255 = vmand %vm1239, %vm785
      %vm1256 = vmand %vm1240, %vm786
      %vm1257 = vmand %vm1241, %vm787
      %vm1258 = vmand %vm1242, %vm788
      %vm1259 = vmand %vm1243, %vm789
      %vm1260 = vmand %vm1244, %vm790
      %vm1261 = vmand %vm1245, %vm791
      %vm1262 = vmand %vm1246, %vm792
      %vm1263 = vmand %vm1247, %vm793
      %vm1264 = vmpackc.low %vm1249, %vm1248
      %vm1265 = vmpackc.low %vm1251, %vm1250
      %v1266 = vsel %vm1264, 16711935, 0
      %v1267 = vsel %vm1265, 16711935, 0
      %v1268 = vpack.c.b8 %v1267, %v1266
      %vm1269 = vnez %v1268
      %vm1270 = vmpackc.low %vm1253, %vm1252
      %vm1271 = vmpackc.low %vm1255, %vm1254
      %v1272 = vsel %vm1270, 16711935, 0
      %v1273 = vsel %vm1271, 16711935, 0
      %v1274 = vpack.c.b8 %v1273, %v1272
      %vm1275 = vnez %v1274
      %vm1276 = vmpackc.low %vm1257, %vm1256
      %vm1277 = vmpackc.low %vm1259, %vm1258
      %v1278 = vsel %vm1276, 16711935, 0
      %v1279 = vsel %vm1277, 16711935, 0
      %v1280 = vpack.c.b8 %v1279, %v1278
      %vm1281 = vnez %v1280
      %vm1282 = vmpackc.low %vm1261, %vm1260
      %vm1283 = vmpackc.low %vm1263, %vm1262
      %v1284 = vsel %vm1282, 16711935, 0
      %v1285 = vsel %vm1283, 16711935, 0
      %v1286 = vpack.c.b8 %v1285, %v1284
      %vm1287 = vnez %v1286
      %v1288 = vsel %vm1269, 16843009, 0
      %v1289 = vsel %vm1275, 16843009, 0
      %v1290 = vsel %vm1281, 16843009, 0
      %v1291 = vsel %vm1287, 16843009, 0
      %v1292 = vunpack.c.0.s8 %v1288
      %v1293 = vunpack.c.1.s8 %v1288
      %v1294 = vunpack.c.2.s8 %v1288
      %v1295 = vunpack.c.3.s8 %v1288
      %v1296 = vunpack.c.0.s8 %v1289
      %v1297 = vunpack.c.1.s8 %v1289
      %v1298 = vunpack.c.2.s8 %v1289
      %v1299 = vunpack.c.3.s8 %v1289
      %v1300 = vunpack.c.0.s8 %v1290
      %v1301 = vunpack.c.1.s8 %v1290
      %v1302 = vunpack.c.2.s8 %v1290
      %v1303 = vunpack.c.3.s8 %v1290
      %v1304 = vunpack.c.0.s8 %v1291
      %v1305 = vunpack.c.1.s8 %v1291
      %v1306 = vunpack.c.2.s8 %v1291
      %v1307 = vunpack.c.3.s8 %v1291
      %v1308 = vpack.c.b16 %v1292, %v1292
      %v1309 = vpack.c.b8 %v1308, %v1308
      %v1310 = vpack.c.b16 %v1293, %v1293
      %v1311 = vpack.c.b8 %v1310, %v1310
      %v1312 = vpack.c.b16 %v1294, %v1294
      %v1313 = vpack.c.b8 %v1312, %v1312
      %v1314 = vpack.c.b16 %v1295, %v1295
      %v1315 = vpack.c.b8 %v1314, %v1314
      %v1316 = vpack.c.b16 %v1296, %v1296
      %v1317 = vpack.c.b8 %v1316, %v1316
      %v1318 = vpack.c.b16 %v1297, %v1297
      %v1319 = vpack.c.b8 %v1318, %v1318
      %v1320 = vpack.c.b16 %v1298, %v1298
      %v1321 = vpack.c.b8 %v1320, %v1320
      %v1322 = vpack.c.b16 %v1299, %v1299
      %v1323 = vpack.c.b8 %v1322, %v1322
      %v1324 = vpack.c.b16 %v1300, %v1300
      %v1325 = vpack.c.b8 %v1324, %v1324
      %v1326 = vpack.c.b16 %v1301, %v1301
      %v1327 = vpack.c.b8 %v1326, %v1326
      %v1328 = vpack.c.b16 %v1302, %v1302
      %v1329 = vpack.c.b8 %v1328, %v1328
      %v1330 = vpack.c.b16 %v1303, %v1303
      %v1331 = vpack.c.b8 %v1330, %v1330
      %v1332 = vpack.c.b16 %v1304, %v1304
      %v1333 = vpack.c.b8 %v1332, %v1332
      %v1334 = vpack.c.b16 %v1305, %v1305
      %v1335 = vpack.c.b8 %v1334, %v1334
      %v1336 = vpack.c.b16 %v1306, %v1306
      %v1337 = vpack.c.b8 %v1336, %v1336
      %v1338 = vpack.c.b16 %v1307, %v1307
      %v1339 = vpack.c.b8 %v1338, %v1338
      %1340 = vst [vmem:[%s206] sm:$0x3] %v1309
      %1341 = vst [vmem:[%s206 + $0x2] sm:$0x3] %v1311
      %1342 = vst [vmem:[%s206 + $0x4] sm:$0x3] %v1313
      %1343 = vst [vmem:[%s206 + $0x6] sm:$0x3] %v1315
      %1344 = vst [vmem:[%s206 + $0x8] sm:$0x3] %v1317
      %1345 = vst [vmem:[%s206 + $0xa] sm:$0x3] %v1319
      %1346 = vst [vmem:[%s206 + $0xc] sm:$0x3] %v1321
      %1347 = vst [vmem:[%s206 + $0xe] sm:$0x3] %v1323
      %1348 = vst [vmem:[%s206 + $0x10] sm:$0x3] %v1325
      %1349 = vst [vmem:[%s206 + $0x12] sm:$0x3] %v1327
      %1350 = vst [vmem:[%s206 + $0x14] sm:$0x3] %v1329
      %1351 = vst [vmem:[%s206 + $0x16] sm:$0x3] %v1331
      %1352 = vst [vmem:[%s206 + $0x18] sm:$0x3] %v1333
      %1353 = vst [vmem:[%s206 + $0x1a] sm:$0x3] %v1335
      %1354 = vst [vmem:[%s206 + $0x1c] sm:$0x3] %v1337
      %1355 = vst [vmem:[%s206 + $0x1e] sm:$0x3] %v1339
      %s1356 = smul.u32 4, %s18
      %p1357 = scmp.lt.s32.totalorder %s17, 1
      %s1358 = scalar_select %p1357, %s17, 1
      %p1359 = scmp.lt.s32.totalorder %s1356, 3
      %s1360 = scalar_select %p1359, %s1356, 3
      %s1361 = smul.addr %s1360, 4
      %s1362 = smul.addr %s1358, 16
      %s1363 = sadd.s32 %s1361, %s1362
      %s1364 = smul.addr %s1363, 2
      %s1365 = scalar_lea.vmem %s2, %s1364
      // Predicated region
      $region29: #{hard_detection.1} parent=27 // pred_check
        %p1366 = pneg %p99
      $region30: #{hard_detection.1} parent=27 // pred_check_branch
        %1368 = sbr.rel (%p1366) target = $region32
      $region31: #{hard_detection.1} parent=27 // pred_region
        %s1369 = smul.u32 4, %s18
      $region32: #{hard_detection.1} parent=27 // pred_fallthru
        _
    $region28: #{hard_detection.1} parent=5 // pred_fallthru
      _
    %p1370 = scmp.le.s32.totalorder 2, %s8
    // Predicated region
    $region33: #{hard_detection.1} parent=5 // pred_check
      %p1371 = pneg %p1370
    $region34: #{hard_detection.1} parent=5 // pred_check_branch
      %1373 = sbr.rel (%p1371) target = $region36
    $region35: #{hard_detection.1} parent=5 // pred_region
      %s1374 = ssub.s32 %s8, 2
      // Predicated region
      $region37: #{hard_detection.1} parent=35 // pred_check
        %p1375 = pneg %p105
      $region38: #{hard_detection.1} parent=35 // pred_check_branch
        %1377 = sbr.rel (%p1375) target = $region40
      $region39: #{hard_detection.1} parent=35 // pred_region
        %s1378 = smul.u32 4, %s20
        %p1379 = scmp.lt.s32.totalorder %s19, 1
        %s1380 = scalar_select %p1379, %s19, 1
        %p1381 = scmp.lt.s32.totalorder %s1378, 3
        %s1382 = scalar_select %p1381, %s1378, 3
        %s1383 = smul.addr %s1382, 4
        %s1384 = smul.addr %s1380, 16
        %s1385 = sadd.s32 %s1383, %s1384
        %s1386 = smul.addr %s1385, 2
        %s1387 = scalar_lea.vmem %s2, %s1386
      $region40: #{hard_detection.1} parent=35 // pred_fallthru
        _
    $region36: #{hard_detection.1} parent=5 // pred_fallthru
      _
  $region6: #{hard_detection.1} parent=0 // loop_footer
    %s12 = sadd.s32 1, %s8
  $region7: #{hard_detection.1} parent=0 // loop_footer_branch
    %7 = sbr.rel target = $region3
  $region8: #{hard_detection.1} parent=0 // loop_exit
    _

</llo_original>
